<compile_context>
chip_gen: v6e
topology: v6e:2x2x1
jax: 0.10.0
libtpu: 0.0.40
codegen_flags: <defaults>
</compile_context>

<pallas_src>
import math

import numpy as np
import jax
import jax.numpy as jnp
from jax.experimental import pallas as pl
from jax.experimental.pallas import tpu as pltpu


def _level_params(H, W, level):
    """Exactly reproduce the PyTorch kernel/stride/padding arithmetic."""
    kh = math.ceil(H / level)
    kw = math.ceil(W / level)
    sh, sw = kh, kw
    ph = math.floor((kh * level - H + 1) / 2)
    pw = math.floor((kw * level - W + 1) / 2)
    # PyTorch would raise "pad should be at most half of kernel size" here
    # (degenerate level > H or W); mirror that instead of computing garbage.
    if 2 * ph > kh or 2 * pw > kw:
        raise ValueError(
            f"pad larger than half of kernel size (level={level}, H={H}, W={W})")
    oh = (H + 2 * ph - kh) // sh + 1
    ow = (W + 2 * pw - kw) // sw + 1
    return kh, kw, sh, sw, ph, pw, oh, ow


def _build_avg_matrix(H, W, levels):
    """Static pooling matrix P so that x2d @ P == all avg-pool levels fused.

    avg_pool2d default count_include_pad=True: padded zeros contribute 0 and
    the divisor is the full kh*kw, so clipped windows simply get weight
    1/(kh*kw) on their valid elements.
    """
    K = sum(oh * ow for (*_, oh, ow) in levels)
    P = np.zeros((H * W, K), dtype=np.float32)
    off = 0
    for (kh, kw, sh, sw, ph, pw, oh, ow) in levels:
        inv = 1.0 / float(kh * kw)
        for i in range(oh):
            r0, r1 = max(i * sh - ph, 0), min(i * sh - ph + kh, H)
            for j in range(ow):
                c0, c1 = max(j * sw - pw, 0), min(j * sw - pw + kw, W)
                col = off + i * ow + j
                for r in range(r0, r1):
                    P[r * W + c0:r * W + c1, col] = inv
        off += oh * ow
    return P


def _make_max_kernel(Rt, H, W, levels):
    """Fused max-pool kernel over a (Rt, H*W) lane-dense tile."""
    offs, off = [], 0
    for (*_, oh, ow) in levels:
        offs.append(off)
        off += oh * ow

    def kernel(x_ref, o_ref):
        x = x_ref[...]                       # (Rt, H*W) — one wide load
        x3 = x.reshape(Rt, H, W)
        for (kh, kw, sh, sw, ph, pw, oh, ow), base in zip(levels, offs):
            # Stage 1: reduce each output column's W-range (clipped window ==
            # -inf padding for max).  -> (Rt, ow, H)
            cols = []
            for j in range(ow):
                c0, c1 = max(j * sw - pw, 0), min(j * sw - pw + kw, W)
                cols.append(jnp.max(x3[:, :, c0:c1], axis=2))   # (Rt, H)
            colmax = jnp.stack(cols, axis=1)                    # (Rt, ow, H)
            # Stage 2: reduce each output row's H-range. -> (Rt, oh, ow)
            rows_out = []
            for i in range(oh):
                r0, r1 = max(i * sh - ph, 0), min(i * sh - ph + kh, H)
                rows_out.append(jnp.max(colmax[:, :, r0:r1], axis=2))  # (Rt, ow)
            pooled = jnp.stack(rows_out, axis=1)                # (Rt, oh, ow)
            o_ref[:, base:base + oh * ow] = (
                pooled.reshape(Rt, oh * ow).astype(o_ref.dtype))

    return kernel


def _make_avg_kernel():
    """Fused avg-pool kernel: one MXU matmul covers every level/window."""
    def kernel(x_ref, p_ref, o_ref):
        x = x_ref[...].astype(jnp.float32)
        o_ref[...] = jnp.dot(
            x, p_ref[...], preferred_element_type=jnp.float32
        ).astype(o_ref.dtype)
    return kernel


def _row_tile(rows, hw, itemsize):
    """Pick a row tile: big enough to amortize per-step overhead, small
    enough that 2x double-buffered input tiles fit comfortably in VMEM on
    every generation (v7x: 64 MiB physical / 32 MiB default scoped)."""
    target_bytes = 4 * 1024 * 1024          # per input buffer
    cap = max(8, target_bytes // max(1, hw * itemsize))
    if rows <= cap:
        return rows
    t = (cap // 8) * 8
    while t >= 8:
        if rows % t == 0:
            return t
        t -= 8
    return rows                              # fallback: single block


def spp_layer(x, num_levels, pool_type='max_pool'):
    """JAX/Pallas equivalent of SPPLayer.forward (input NCHW)."""
    N, C, H, W = x.shape
    levels = [_level_params(H, W, l + 1) for l in range(num_levels)]
    sizes = [oh * ow for (*_, oh, ow) in levels]
    K = sum(sizes)

    rows, HW = N * C, H * W
    x2d = x.reshape(rows, HW)                 # lane-dense view: H*W on lanes
    itemsize = jnp.dtype(x.dtype).itemsize
    Rt = _row_tile(rows, HW, itemsize)
    grid = (rows // Rt,)

    if pool_type == 'max_pool':
        kernel = _make_max_kernel(Rt, H, W, levels)
        in_specs = [
            pl.BlockSpec((Rt, HW), lambda r: (r, 0),
                         memory_space=pltpu.MemorySpace.VMEM),
        ]
        args = (x2d,)
        cost = pl.CostEstimate(
            flops=rows * HW * num_levels,
            transcendentals=0,
            bytes_accessed=rows * HW * itemsize + rows * K * itemsize)
    else:
        P = jnp.asarray(_build_avg_matrix(H, W, levels))
        kernel = _make_avg_kernel()
        in_specs = [
            pl.BlockSpec((Rt, HW), lambda r: (r, 0),
                         memory_space=pltpu.MemorySpace.VMEM),
            pl.BlockSpec((HW, K), lambda r: (0, 0),
                         memory_space=pltpu.MemorySpace.VMEM),
        ]
        args = (x2d, P)
        cost = pl.CostEstimate(
            flops=2 * rows * HW * K,
            transcendentals=0,
            bytes_accessed=(rows * HW + rows * K) * itemsize + HW * K * 4)

    out = pl.pallas_call(
        kernel,
        out_shape=jax.ShapeDtypeStruct((rows, K), x.dtype),
        grid=grid,
        in_specs=in_specs,
        out_specs=pl.BlockSpec((Rt, K), lambda r: (r, 0),
                               memory_space=pltpu.MemorySpace.VMEM),
        compiler_params=pltpu.CompilerParams(
            dimension_semantics=("parallel",)),
        cost_estimate=cost,
    )(*args)

    # Reorder to PyTorch's flatten/concat layout:
    # per level l: (N, C, oh*ow) -> (N, C*oh*ow), then concat over levels.
    out3 = out.reshape(N, C, K)
    pieces, off = [], 0
    for k in sizes:
        pieces.append(out3[:, :, off:off + k].reshape(N, C * k))
        off += k
    return jnp.concatenate(pieces, axis=1)


def _spp_reference(x, num_levels, pool_type):
    """Pure-JAX reference mirroring F.max_pool2d / F.avg_pool2d semantics."""
    N, C, H, W = x.shape
    pieces = []
    for l in range(num_levels):
        kh, kw, sh, sw, ph, pw, oh, ow = _level_params(H, W, l + 1)
        vals = []
        for i in range(oh):
            r0, r1 = max(i * sh - ph, 0), min(i * sh - ph + kh, H)
            for j in range(ow):
                c0, c1 = max(j * sw - pw, 0), min(j * sw - pw + kw, W)
                win = x[:, :, r0:r1, c0:c1]
                if pool_type == 'max_pool':
                    vals.append(jnp.max(win, axis=(2, 3)))
                else:
                    vals.append(jnp.sum(win.astype(jnp.float32), axis=(2, 3))
                                / float(kh * kw))
        lvl = jnp.stack(vals, axis=-1).astype(x.dtype)      # (N, C, oh*ow)
        pieces.append(lvl.reshape(N, C * oh * ow))
    return jnp.concatenate(pieces, axis=1)


if __name__ == "__main__":
    key = jax.random.PRNGKey(0)
    # Small shapes consistent with the module's forward: batch=2, channels=4,
    # spatial 16x16, 3 pyramid levels -> output (2, 4*(1+4+9)) = (2, 56).
    x = jax.random.normal(key, (2, 4, 16, 16), dtype=jnp.float32)

    num_levels = 3
    y_max = spp_layer(x, num_levels, pool_type='max_pool')
    y_avg = spp_layer(x, num_levels, pool_type='avg_pool')
    jax.block_until_ready(y_max)
    jax.block_until_ready(y_avg)

    expected_feats = 4 * sum((l + 1) ** 2 for l in range(num_levels))
    assert y_max.shape == (2, expected_feats), y_max.shape
    assert y_avg.shape == (2, expected_feats), y_avg.shape

    ref_max = _spp_reference(x, num_levels, 'max_pool')
    ref_avg = _spp_reference(x, num_levels, 'avg_pool')
    assert jnp.allclose(y_max, ref_max, rtol=1e-5, atol=1e-5)
    assert jnp.allclose(y_avg, ref_avg, rtol=1e-5, atol=1e-5)

    print("KERNEL_OK")
</pallas_src>

<mosaic_0001>
module attributes {stable_mosaic.version = 11 : i64} {
  func.func @kernel(%arg0: i32, %arg1: memref<8x256xf32, #tpu.memory_space<vmem>>, %arg2: memref<8x14xf32, #tpu.memory_space<vmem>>) attributes {dimension_semantics = [#tpu.dimension_semantics<parallel>], iteration_bounds = array<i64: 1>, scalar_prefetch = 0 : i64, scratch_operands = 0 : i64, tpu.core_type = #tpu.core_type<tc>, window_params = [{transform_indices = @transform_0, window_bounds = array<i64: 8, 256>}, {transform_indices = @transform_1, window_bounds = array<i64: 8, 14>}]} {
    %c0 = arith.constant 0 : index
    %c0_0 = arith.constant 0 : index
    %0 = vector.load %arg1[%c0, %c0_0] : memref<8x256xf32, #tpu.memory_space<vmem>>, vector<8x256xf32>
    %1 = vector.shape_cast %0 : vector<8x256xf32> to vector<8x16x16xf32>
    %cst = arith.constant dense<0xFF800000> : vector<8x16xf32>
    %2 = vector.multi_reduction <maximumf>, %1, %cst [2] : vector<8x16x16xf32> to vector<8x16xf32>
    %3 = vector.shape_cast %2 : vector<8x16xf32> to vector<8x1x16xf32>
    %cst_1 = arith.constant dense<0xFF800000> : vector<8x1xf32>
    %4 = vector.multi_reduction <maximumf>, %3, %cst_1 [2] : vector<8x1x16xf32> to vector<8x1xf32>
    %5 = vector.shape_cast %4 : vector<8x1xf32> to vector<8x1x1xf32>
    %6 = vector.shape_cast %5 : vector<8x1x1xf32> to vector<8x1xf32>
    %c0_2 = arith.constant 0 : index
    %c0_3 = arith.constant 0 : index
    %7 = vector.load %arg2[%c0_2, %c0_3] : memref<8x14xf32, #tpu.memory_space<vmem>>, vector<8x1xf32>
    tpu.vector_store %arg2[%c0_2, %c0_3], %6 {strides = array<i32>} : memref<8x14xf32, #tpu.memory_space<vmem>>, vector<8x1xf32>,
    %8 = vector.extract_strided_slice %1 {offsets = [0, 0, 0], sizes = [8, 16, 8], strides = [1, 1, 1]} : vector<8x16x16xf32> to vector<8x16x8xf32>
    %cst_4 = arith.constant dense<0xFF800000> : vector<8x16xf32>
    %9 = vector.multi_reduction <maximumf>, %8, %cst_4 [2] : vector<8x16x8xf32> to vector<8x16xf32>
    %10 = vector.extract_strided_slice %1 {offsets = [0, 0, 8], sizes = [8, 16, 8], strides = [1, 1, 1]} : vector<8x16x16xf32> to vector<8x16x8xf32>
    %cst_5 = arith.constant dense<0xFF800000> : vector<8x16xf32>
    %11 = vector.multi_reduction <maximumf>, %10, %cst_5 [2] : vector<8x16x8xf32> to vector<8x16xf32>
    %12 = vector.shape_cast %9 : vector<8x16xf32> to vector<8x1x16xf32>
    %13 = vector.shape_cast %11 : vector<8x16xf32> to vector<8x1x16xf32>
    %14 = tpu.concatenate %12, %13 in 1 : vector<8x1x16xf32>, vector<8x1x16xf32> -> vector<8x2x16xf32>
    %15 = vector.extract_strided_slice %14 {offsets = [0, 0, 0], sizes = [8, 2, 8], strides = [1, 1, 1]} : vector<8x2x16xf32> to vector<8x2x8xf32>
    %cst_6 = arith.constant dense<0xFF800000> : vector<8x2xf32>
    %16 = vector.multi_reduction <maximumf>, %15, %cst_6 [2] : vector<8x2x8xf32> to vector<8x2xf32>
    %17 = vector.extract_strided_slice %14 {offsets = [0, 0, 8], sizes = [8, 2, 8], strides = [1, 1, 1]} : vector<8x2x16xf32> to vector<8x2x8xf32>
    %cst_7 = arith.constant dense<0xFF800000> : vector<8x2xf32>
    %18 = vector.multi_reduction <maximumf>, %17, %cst_7 [2] : vector<8x2x8xf32> to vector<8x2xf32>
    %19 = vector.shape_cast %16 : vector<8x2xf32> to vector<8x1x2xf32>
    %20 = vector.shape_cast %18 : vector<8x2xf32> to vector<8x1x2xf32>
    %21 = tpu.concatenate %19, %20 in 1 : vector<8x1x2xf32>, vector<8x1x2xf32> -> vector<8x2x2xf32>
    %22 = vector.shape_cast %21 : vector<8x2x2xf32> to vector<8x4xf32>
    %c0_8 = arith.constant 0 : index
    %c1 = arith.constant 1 : index
    %23 = vector.load %arg2[%c0_8, %c1] : memref<8x14xf32, #tpu.memory_space<vmem>>, vector<8x4xf32>
    tpu.vector_store %arg2[%c0_8, %c1], %22 {strides = array<i32>} : memref<8x14xf32, #tpu.memory_space<vmem>>, vector<8x4xf32>,
    %24 = vector.extract_strided_slice %1 {offsets = [0, 0, 0], sizes = [8, 16, 5], strides = [1, 1, 1]} : vector<8x16x16xf32> to vector<8x16x5xf32>
    %cst_9 = arith.constant dense<0xFF800000> : vector<8x16xf32>
    %25 = vector.multi_reduction <maximumf>, %24, %cst_9 [2] : vector<8x16x5xf32> to vector<8x16xf32>
    %26 = vector.extract_strided_slice %1 {offsets = [0, 0, 5], sizes = [8, 16, 6], strides = [1, 1, 1]} : vector<8x16x16xf32> to vector<8x16x6xf32>
    %cst_10 = arith.constant dense<0xFF800000> : vector<8x16xf32>
    %27 = vector.multi_reduction <maximumf>, %26, %cst_10 [2] : vector<8x16x6xf32> to vector<8x16xf32>
    %28 = vector.extract_strided_slice %1 {offsets = [0, 0, 11], sizes = [8, 16, 5], strides = [1, 1, 1]} : vector<8x16x16xf32> to vector<8x16x5xf32>
    %cst_11 = arith.constant dense<0xFF800000> : vector<8x16xf32>
    %29 = vector.multi_reduction <maximumf>, %28, %cst_11 [2] : vector<8x16x5xf32> to vector<8x16xf32>
    %30 = vector.shape_cast %25 : vector<8x16xf32> to vector<8x1x16xf32>
    %31 = vector.shape_cast %27 : vector<8x16xf32> to vector<8x1x16xf32>
    %32 = vector.shape_cast %29 : vector<8x16xf32> to vector<8x1x16xf32>
    %33 = tpu.concatenate %30, %31, %32 in 1 : vector<8x1x16xf32>, vector<8x1x16xf32>, vector<8x1x16xf32> -> vector<8x3x16xf32>
    %34 = vector.extract_strided_slice %33 {offsets = [0, 0, 0], sizes = [8, 3, 5], strides = [1, 1, 1]} : vector<8x3x16xf32> to vector<8x3x5xf32>
    %cst_12 = arith.constant dense<0xFF800000> : vector<8x3xf32>
    %35 = vector.multi_reduction <maximumf>, %34, %cst_12 [2] : vector<8x3x5xf32> to vector<8x3xf32>
    %36 = vector.extract_strided_slice %33 {offsets = [0, 0, 5], sizes = [8, 3, 6], strides = [1, 1, 1]} : vector<8x3x16xf32> to vector<8x3x6xf32>
    %cst_13 = arith.constant dense<0xFF800000> : vector<8x3xf32>
    %37 = vector.multi_reduction <maximumf>, %36, %cst_13 [2] : vector<8x3x6xf32> to vector<8x3xf32>
    %38 = vector.extract_strided_slice %33 {offsets = [0, 0, 11], sizes = [8, 3, 5], strides = [1, 1, 1]} : vector<8x3x16xf32> to vector<8x3x5xf32>
    %cst_14 = arith.constant dense<0xFF800000> : vector<8x3xf32>
    %39 = vector.multi_reduction <maximumf>, %38, %cst_14 [2] : vector<8x3x5xf32> to vector<8x3xf32>
    %40 = vector.shape_cast %35 : vector<8x3xf32> to vector<8x1x3xf32>
    %41 = vector.shape_cast %37 : vector<8x3xf32> to vector<8x1x3xf32>
    %42 = vector.shape_cast %39 : vector<8x3xf32> to vector<8x1x3xf32>
    %43 = tpu.concatenate %40, %41, %42 in 1 : vector<8x1x3xf32>, vector<8x1x3xf32>, vector<8x1x3xf32> -> vector<8x3x3xf32>
    %44 = vector.shape_cast %43 : vector<8x3x3xf32> to vector<8x9xf32>
    %c0_15 = arith.constant 0 : index
    %c5 = arith.constant 5 : index
    %45 = vector.load %arg2[%c0_15, %c5] : memref<8x14xf32, #tpu.memory_space<vmem>>, vector<8x9xf32>
    tpu.vector_store %arg2[%c0_15, %c5], %44 {strides = array<i32>} : memref<8x14xf32, #tpu.memory_space<vmem>>, vector<8x9xf32>,
    return
  }
  func.func @transform_0(%arg0: i32) -> (i32, i32) {
    %c0_i32 = arith.constant 0 : i32
    %c0_i32_0 = arith.constant 0 : i32
    return %arg0, %c0_i32 : i32, i32
  }
  func.func @transform_1(%arg0: i32) -> (i32, i32) {
    %c0_i32 = arith.constant 0 : i32
    %c0_i32_0 = arith.constant 0 : i32
    return %arg0, %c0_i32 : i32, i32
  }
}

</mosaic_0001>

<llo_original>
// kernel: tpu_custom_call.1
$region0: #{tpu_custom_call.1}
  #allocation0 [shape = 'u32[]', space=smem, size = 0x4, offset = 0x4, fixed_abs, tag = 'smem constant byte address 0x4 - core index']
  #allocation1 [shape = 'u32[144,128]{1,0:T(1,128)}', space=vmem, size = 0x12000, scoped, tag = 'internal scratch']
  %s0 = inlined_call_operand.hbm [shape: f32[8,256], index: 0, kind: input, shape index: {}]
  %s1 = inlined_call_operand.hbm [shape: f32[8,14], index: 1, kind: output, shape index: {}]
  %s2 = sld [smem:[#allocation0]]
  $region18: #{tpu_custom_call.1} parent=0
    _
  %s4 = ssub.s32 1, %s2
  %s5 = scalar_select 0, %s4, %s2
  $region1: #{tpu_custom_call.1} parent=0
    #allocation2 [shape = 'u8[8192]{0}', space=vmem, size = 0x2000, scoped, tag = 'input window, operand 0, single buffered']
    #allocation3 [shape = 's32[1]{0}', space=sflag, size = 0x4, scoped, tag = 'scoped memory for tpu_custom_call.1']
    #allocation4 [shape = 's32[1]{0}', space=sflag, size = 0x4, scoped, tag = 'scoped memory for tpu_custom_call.1']
    #allocation5 [shape = 'u8[4096]{0}', space=vmem, size = 0x1000, scoped, tag = 'output window, operand 0, single buffered']
    %6 = vsyncpa [#allocation3], 0
    %7 = vsyncpa [#allocation4], 0
    // Predicated region
    $region2: #{tpu_custom_call.1} parent=1 // pred_check
      _
    $region3: #{tpu_custom_call.1} parent=1 // pred_check_branch
      %9 = sbr.rel (0) target = $region5
    $region4: #{tpu_custom_call.1} parent=1 // pred_region
      %s11 = ssub.s32 256, 256
      %12 = vsyncadd [#allocation3], %s11
      %s14 = sshll.u32 [#allocation2], 4
      %s15 = int_to_ptr.vmem [resolvable:$true] %s14
      %17 = dma.hbm_to_vmem [thread:$0]  %s0, 256, %s15, [#allocation3]
    $region5: #{tpu_custom_call.1} parent=1 // pred_fallthru
      _
    // Predicated region
    $region6: #{tpu_custom_call.1} parent=1 // pred_check
      _
    $region7: #{tpu_custom_call.1} parent=1 // pred_check_branch
      %19 = sbr.rel (0) target = $region9
    $region8: #{tpu_custom_call.1} parent=1 // pred_region
      %20 = dma.done [#allocation3], 256
    $region9: #{tpu_custom_call.1} parent=1 // pred_fallthru
      _
    %v21 = vld [vmem:[#allocation2] sm:$0xff]
    %v22 = vld [vmem:[#allocation2 + $0x8] sm:$0xff]
    %24 = vrot.lane.b32.xlu0 %v21, 112
    %v25 = vpop.permute.xlu0 %24
    %27 = vrot.lane.b32.xlu0 %v21, 96
    %v28 = vpop.permute.xlu0 %27
    %30 = vrot.lane.b32.xlu0 %v21, 80
    %v31 = vpop.permute.xlu0 %30
    %33 = vrot.lane.b32.xlu0 %v21, 64
    %v34 = vpop.permute.xlu0 %33
    %36 = vrot.lane.b32.xlu0 %v21, 48
    %v37 = vpop.permute.xlu0 %36
    %39 = vrot.lane.b32.xlu0 %v21, 32
    %v40 = vpop.permute.xlu0 %39
    %42 = vrot.lane.b32.xlu0 %v21, 16
    %v43 = vpop.permute.xlu0 %42
    %46 = vrot.lane.b32.xlu0 %v22, 112
    %v47 = vpop.permute.xlu0 %46
    %49 = vrot.lane.b32.xlu0 %v22, 96
    %v50 = vpop.permute.xlu0 %49
    %52 = vrot.lane.b32.xlu0 %v22, 80
    %v53 = vpop.permute.xlu0 %52
    %55 = vrot.lane.b32.xlu0 %v22, 64
    %v56 = vpop.permute.xlu0 %55
    %58 = vrot.lane.b32.xlu0 %v22, 48
    %v59 = vpop.permute.xlu0 %58
    %61 = vrot.lane.b32.xlu0 %v22, 32
    %v62 = vpop.permute.xlu0 %61
    %64 = vrot.lane.b32.xlu0 %v22, 16
    %v65 = vpop.permute.xlu0 %64
    %v67 = vcombine.low %v21, %v28
    %v68 = vcombine.high %v21, %v28
    %v70 = vunpack.c.l.s4 1983009808
    %v71 = vunpack.c.0.s8 %v70
    %v72 = vlaneseq
    %v73 = vshrl.u32 %v72, 7
    %v74 = vsub.s32 %v71, %v73
    %v75 = vrot.slane %v67, %v74
    %v77 = vunpack.c.l.s4 1983009808
    %v78 = vunpack.c.0.s8 %v77
    %v79 = vlaneseq
    %v80 = vshrl.u32 %v79, 7
    %v81 = vsub.s32 %v78, %v80
    %v82 = vrot.slane %v68, %v81
    %v83 = vcombine.low %v25, %v31
    %v84 = vcombine.high %v25, %v31
    %v86 = vunpack.c.l.s4 1983009808
    %v87 = vunpack.c.0.s8 %v86
    %v88 = vlaneseq
    %v89 = vshrl.u32 %v88, 7
    %v90 = vsub.s32 %v87, %v89
    %v91 = vrot.slane %v83, %v90
    %v93 = vunpack.c.l.s4 1983009808
    %v94 = vunpack.c.0.s8 %v93
    %v95 = vlaneseq
    %v96 = vshrl.u32 %v95, 7
    %v97 = vsub.s32 %v94, %v96
    %v98 = vrot.slane %v84, %v97
    %v99 = vcombine.low %v34, %v40
    %v100 = vcombine.high %v34, %v40
    %v102 = vunpack.c.l.s4 1983009808
    %v103 = vunpack.c.0.s8 %v102
    %v104 = vlaneseq
    %v105 = vshrl.u32 %v104, 7
    %v106 = vsub.s32 %v103, %v105
    %v107 = vrot.slane %v99, %v106
    %v109 = vunpack.c.l.s4 1983009808
    %v110 = vunpack.c.0.s8 %v109
    %v111 = vlaneseq
    %v112 = vshrl.u32 %v111, 7
    %v113 = vsub.s32 %v110, %v112
    %v114 = vrot.slane %v100, %v113
    %v115 = vcombine.low %v37, %v43
    %v116 = vcombine.high %v37, %v43
    %v118 = vunpack.c.l.s4 1983009808
    %v119 = vunpack.c.0.s8 %v118
    %v120 = vlaneseq
    %v121 = vshrl.u32 %v120, 7
    %v122 = vsub.s32 %v119, %v121
    %v123 = vrot.slane %v115, %v122
    %v125 = vunpack.c.l.s4 1983009808
    %v126 = vunpack.c.0.s8 %v125
    %v127 = vlaneseq
    %v128 = vshrl.u32 %v127, 7
    %v129 = vsub.s32 %v126, %v128
    %v130 = vrot.slane %v116, %v129
    %v131 = vcombine.low %v75, %v91
    %v132 = vcombine.high %v75, %v91
    %v134 = vunpack.c.l.s4 1934713408
    %v135 = vunpack.c.0.s8 %v134
    %v136 = vlaneseq
    %v137 = vshrl.u32 %v136, 7
    %v138 = vsub.s32 %v135, %v137
    %v139 = vrot.slane %v131, %v138
    %v141 = vunpack.c.l.s4 1934713408
    %v142 = vunpack.c.0.s8 %v141
    %v143 = vlaneseq
    %v144 = vshrl.u32 %v143, 7
    %v145 = vsub.s32 %v142, %v144
    %v146 = vrot.slane %v132, %v145
    %v147 = vcombine.low %v82, %v98
    %v148 = vcombine.high %v82, %v98
    %v150 = vunpack.c.l.s4 1934713408
    %v151 = vunpack.c.0.s8 %v150
    %v152 = vlaneseq
    %v153 = vshrl.u32 %v152, 7
    %v154 = vsub.s32 %v151, %v153
    %v155 = vrot.slane %v147, %v154
    %v157 = vunpack.c.l.s4 1934713408
    %v158 = vunpack.c.0.s8 %v157
    %v159 = vlaneseq
    %v160 = vshrl.u32 %v159, 7
    %v161 = vsub.s32 %v158, %v160
    %v162 = vrot.slane %v148, %v161
    %v163 = vcombine.low %v107, %v123
    %v164 = vcombine.high %v107, %v123
    %v166 = vunpack.c.l.s4 1934713408
    %v167 = vunpack.c.0.s8 %v166
    %v168 = vlaneseq
    %v169 = vshrl.u32 %v168, 7
    %v170 = vsub.s32 %v167, %v169
    %v171 = vrot.slane %v163, %v170
    %v173 = vunpack.c.l.s4 1934713408
    %v174 = vunpack.c.0.s8 %v173
    %v175 = vlaneseq
    %v176 = vshrl.u32 %v175, 7
    %v177 = vsub.s32 %v174, %v176
    %v178 = vrot.slane %v164, %v177
    %v179 = vcombine.low %v114, %v130
    %v180 = vcombine.high %v114, %v130
    %v182 = vunpack.c.l.s4 1934713408
    %v183 = vunpack.c.0.s8 %v182
    %v184 = vlaneseq
    %v185 = vshrl.u32 %v184, 7
    %v186 = vsub.s32 %v183, %v185
    %v187 = vrot.slane %v179, %v186
    %v189 = vunpack.c.l.s4 1934713408
    %v190 = vunpack.c.0.s8 %v189
    %v191 = vlaneseq
    %v192 = vshrl.u32 %v191, 7
    %v193 = vsub.s32 %v190, %v192
    %v194 = vrot.slane %v180, %v193
    %v195 = vcombine.low %v139, %v171
    %v196 = vcombine.high %v139, %v171
    %v197 = vcombine.low %v146, %v178
    %v198 = vcombine.high %v146, %v178
    %v199 = vcombine.low %v155, %v187
    %v200 = vcombine.high %v155, %v187
    %v201 = vcombine.low %v162, %v194
    %v202 = vcombine.high %v162, %v194
    %v203 = vcombine.low %v22, %v50
    %v204 = vcombine.high %v22, %v50
    %v206 = vunpack.c.l.s4 1983009808
    %v207 = vunpack.c.0.s8 %v206
    %v208 = vlaneseq
    %v209 = vshrl.u32 %v208, 7
    %v210 = vsub.s32 %v207, %v209
    %v211 = vrot.slane %v203, %v210
    %v213 = vunpack.c.l.s4 1983009808
    %v214 = vunpack.c.0.s8 %v213
    %v215 = vlaneseq
    %v216 = vshrl.u32 %v215, 7
    %v217 = vsub.s32 %v214, %v216
    %v218 = vrot.slane %v204, %v217
    %v219 = vcombine.low %v47, %v53
    %v220 = vcombine.high %v47, %v53
    %v222 = vunpack.c.l.s4 1983009808
    %v223 = vunpack.c.0.s8 %v222
    %v224 = vlaneseq
    %v225 = vshrl.u32 %v224, 7
    %v226 = vsub.s32 %v223, %v225
    %v227 = vrot.slane %v219, %v226
    %v229 = vunpack.c.l.s4 1983009808
    %v230 = vunpack.c.0.s8 %v229
    %v231 = vlaneseq
    %v232 = vshrl.u32 %v231, 7
    %v233 = vsub.s32 %v230, %v232
    %v234 = vrot.slane %v220, %v233
    %v235 = vcombine.low %v56, %v62
    %v236 = vcombine.high %v56, %v62
    %v238 = vunpack.c.l.s4 1983009808
    %v239 = vunpack.c.0.s8 %v238
    %v240 = vlaneseq
    %v241 = vshrl.u32 %v240, 7
    %v242 = vsub.s32 %v239, %v241
    %v243 = vrot.slane %v235, %v242
    %v245 = vunpack.c.l.s4 1983009808
    %v246 = vunpack.c.0.s8 %v245
    %v247 = vlaneseq
    %v248 = vshrl.u32 %v247, 7
    %v249 = vsub.s32 %v246, %v248
    %v250 = vrot.slane %v236, %v249
    %v251 = vcombine.low %v59, %v65
    %v252 = vcombine.high %v59, %v65
    %v254 = vunpack.c.l.s4 1983009808
    %v255 = vunpack.c.0.s8 %v254
    %v256 = vlaneseq
    %v257 = vshrl.u32 %v256, 7
    %v258 = vsub.s32 %v255, %v257
    %v259 = vrot.slane %v251, %v258
    %v261 = vunpack.c.l.s4 1983009808
    %v262 = vunpack.c.0.s8 %v261
    %v263 = vlaneseq
    %v264 = vshrl.u32 %v263, 7
    %v265 = vsub.s32 %v262, %v264
    %v266 = vrot.slane %v252, %v265
    %v267 = vcombine.low %v211, %v227
    %v268 = vcombine.high %v211, %v227
    %v270 = vunpack.c.l.s4 1934713408
    %v271 = vunpack.c.0.s8 %v270
    %v272 = vlaneseq
    %v273 = vshrl.u32 %v272, 7
    %v274 = vsub.s32 %v271, %v273
    %v275 = vrot.slane %v267, %v274
    %v277 = vunpack.c.l.s4 1934713408
    %v278 = vunpack.c.0.s8 %v277
    %v279 = vlaneseq
    %v280 = vshrl.u32 %v279, 7
    %v281 = vsub.s32 %v278, %v280
    %v282 = vrot.slane %v268, %v281
    %v283 = vcombine.low %v218, %v234
    %v284 = vcombine.high %v218, %v234
    %v286 = vunpack.c.l.s4 1934713408
    %v287 = vunpack.c.0.s8 %v286
    %v288 = vlaneseq
    %v289 = vshrl.u32 %v288, 7
    %v290 = vsub.s32 %v287, %v289
    %v291 = vrot.slane %v283, %v290
    %v293 = vunpack.c.l.s4 1934713408
    %v294 = vunpack.c.0.s8 %v293
    %v295 = vlaneseq
    %v296 = vshrl.u32 %v295, 7
    %v297 = vsub.s32 %v294, %v296
    %v298 = vrot.slane %v284, %v297
    %v299 = vcombine.low %v243, %v259
    %v300 = vcombine.high %v243, %v259
    %v302 = vunpack.c.l.s4 1934713408
    %v303 = vunpack.c.0.s8 %v302
    %v304 = vlaneseq
    %v305 = vshrl.u32 %v304, 7
    %v306 = vsub.s32 %v303, %v305
    %v307 = vrot.slane %v299, %v306
    %v309 = vunpack.c.l.s4 1934713408
    %v310 = vunpack.c.0.s8 %v309
    %v311 = vlaneseq
    %v312 = vshrl.u32 %v311, 7
    %v313 = vsub.s32 %v310, %v312
    %v314 = vrot.slane %v300, %v313
    %v315 = vcombine.low %v250, %v266
    %v316 = vcombine.high %v250, %v266
    %v318 = vunpack.c.l.s4 1934713408
    %v319 = vunpack.c.0.s8 %v318
    %v320 = vlaneseq
    %v321 = vshrl.u32 %v320, 7
    %v322 = vsub.s32 %v319, %v321
    %v323 = vrot.slane %v315, %v322
    %v325 = vunpack.c.l.s4 1934713408
    %v326 = vunpack.c.0.s8 %v325
    %v327 = vlaneseq
    %v328 = vshrl.u32 %v327, 7
    %v329 = vsub.s32 %v326, %v328
    %v330 = vrot.slane %v316, %v329
    %v331 = vcombine.low %v275, %v307
    %v332 = vcombine.high %v275, %v307
    %v333 = vcombine.low %v282, %v314
    %v334 = vcombine.high %v282, %v314
    %v335 = vcombine.low %v291, %v323
    %v336 = vcombine.high %v291, %v323
    %v337 = vcombine.low %v298, %v330
    %v338 = vcombine.high %v298, %v330
    %vm339 = vcmask 130048
    %v340 = vsel %vm339, %v195, -inf
    %341 = vmax.xlane.f32.xlu0 %v340
    %v342 = vpop.xlane.xlu0 %341
    %v343 = vsel %vm339, %v331, -inf
    %344 = vmax.xlane.f32.xlu0 %v343
    %v345 = vpop.xlane.xlu0 %344
    %v346 = vsel %vm339, %v196, -inf
    %347 = vmax.xlane.f32.xlu0 %v346
    %v348 = vpop.xlane.xlu0 %347
    %v349 = vsel %vm339, %v332, -inf
    %350 = vmax.xlane.f32.xlu0 %v349
    %v351 = vpop.xlane.xlu0 %350
    %v352 = vsel %vm339, %v197, -inf
    %353 = vmax.xlane.f32.xlu0 %v352
    %v354 = vpop.xlane.xlu0 %353
    %v355 = vsel %vm339, %v333, -inf
    %356 = vmax.xlane.f32.xlu0 %v355
    %v357 = vpop.xlane.xlu0 %356
    %v358 = vsel %vm339, %v198, -inf
    %359 = vmax.xlane.f32.xlu0 %v358
    %v360 = vpop.xlane.xlu0 %359
    %v361 = vsel %vm339, %v334, -inf
    %362 = vmax.xlane.f32.xlu0 %v361
    %v363 = vpop.xlane.xlu0 %362
    %v364 = vsel %vm339, %v199, -inf
    %365 = vmax.xlane.f32.xlu0 %v364
    %v366 = vpop.xlane.xlu0 %365
    %v367 = vsel %vm339, %v335, -inf
    %368 = vmax.xlane.f32.xlu0 %v367
    %v369 = vpop.xlane.xlu0 %368
    %v370 = vsel %vm339, %v200, -inf
    %371 = vmax.xlane.f32.xlu0 %v370
    %v372 = vpop.xlane.xlu0 %371
    %v373 = vsel %vm339, %v336, -inf
    %374 = vmax.xlane.f32.xlu0 %v373
    %v375 = vpop.xlane.xlu0 %374
    %v376 = vsel %vm339, %v201, -inf
    %377 = vmax.xlane.f32.xlu0 %v376
    %v378 = vpop.xlane.xlu0 %377
    %v379 = vsel %vm339, %v337, -inf
    %380 = vmax.xlane.f32.xlu0 %v379
    %v381 = vpop.xlane.xlu0 %380
    %v382 = vsel %vm339, %v202, -inf
    %383 = vmax.xlane.f32.xlu0 %v382
    %v384 = vpop.xlane.xlu0 %383
    %v385 = vsel %vm339, %v338, -inf
    %386 = vmax.xlane.f32.xlu0 %v385
    %v387 = vpop.xlane.xlu0 %386
    %v388 = vmax.f32 %v342, %v345
    %v389 = vrot.slane %v388, 4
    %v390 = vmax.f32 %v388, %v389
    %v391 = vrot.slane %v390, 2
    %v392 = vmax.f32 %v390, %v391
    %v393 = vrot.slane %v392, 1
    %v394 = vmax.f32 %v392, %v393
    %v395 = vmax.f32 %v348, %v351
    %v396 = vrot.slane %v395, 4
    %v397 = vmax.f32 %v395, %v396
    %v398 = vrot.slane %v397, 2
    %v399 = vmax.f32 %v397, %v398
    %v400 = vrot.slane %v399, 1
    %v401 = vmax.f32 %v399, %v400
    %v402 = vmax.f32 %v354, %v357
    %v403 = vrot.slane %v402, 4
    %v404 = vmax.f32 %v402, %v403
    %v405 = vrot.slane %v404, 2
    %v406 = vmax.f32 %v404, %v405
    %v407 = vrot.slane %v406, 1
    %v408 = vmax.f32 %v406, %v407
    %v409 = vmax.f32 %v360, %v363
    %v410 = vrot.slane %v409, 4
    %v411 = vmax.f32 %v409, %v410
    %v412 = vrot.slane %v411, 2
    %v413 = vmax.f32 %v411, %v412
    %v414 = vrot.slane %v413, 1
    %v415 = vmax.f32 %v413, %v414
    %v416 = vmax.f32 %v366, %v369
    %v417 = vrot.slane %v416, 4
    %v418 = vmax.f32 %v416, %v417
    %v419 = vrot.slane %v418, 2
    %v420 = vmax.f32 %v418, %v419
    %v421 = vrot.slane %v420, 1
    %v422 = vmax.f32 %v420, %v421
    %v423 = vmax.f32 %v372, %v375
    %v424 = vrot.slane %v423, 4
    %v425 = vmax.f32 %v423, %v424
    %v426 = vrot.slane %v425, 2
    %v427 = vmax.f32 %v425, %v426
    %v428 = vrot.slane %v427, 1
    %v429 = vmax.f32 %v427, %v428
    %v430 = vmax.f32 %v378, %v381
    %v431 = vrot.slane %v430, 4
    %v432 = vmax.f32 %v430, %v431
    %v433 = vrot.slane %v432, 2
    %v434 = vmax.f32 %v432, %v433
    %v435 = vrot.slane %v434, 1
    %v436 = vmax.f32 %v434, %v435
    %v437 = vmax.f32 %v384, %v387
    %v438 = vrot.slane %v437, 4
    %v439 = vmax.f32 %v437, %v438
    %v440 = vrot.slane %v439, 2
    %v441 = vmax.f32 %v439, %v440
    %v442 = vrot.slane %v441, 1
    %v443 = vmax.f32 %v441, %v442
    %vm452 = vcmask 1041409
    %v453 = vsel %vm452, %v401, %v394
    %vm454 = vcmask 1042434
    %v455 = vsel %vm454, %v408, %v453
    %vm456 = vcmask 1043459
    %v457 = vsel %vm456, %v415, %v455
    %vm458 = vcmask 1044484
    %v459 = vsel %vm458, %v422, %v457
    %vm460 = vcmask 1045509
    %v461 = vsel %vm460, %v429, %v459
    %vm462 = vcmask 1046534
    %v463 = vsel %vm462, %v436, %v461
    %vm464 = vcmask 1047559
    %v465 = vsel %vm464, %v443, %v463
    %vm467 = vcmask 7168
    %468 = vst.msk [vmem:[#allocation5] sm:$0xff] %vm467, %v465
    %vm469 = vcmask 64512
    %v470 = vsel %vm469, %v195, -inf
    %471 = vmax.xlane.f32.xlu0 %v470
    %v472 = vpop.xlane.xlu0 %471
    %v473 = vsel %vm469, %v331, -inf
    %474 = vmax.xlane.f32.xlu0 %v473
    %v475 = vpop.xlane.xlu0 %474
    %v476 = vsel %vm469, %v196, -inf
    %477 = vmax.xlane.f32.xlu0 %v476
    %v478 = vpop.xlane.xlu0 %477
    %v479 = vsel %vm469, %v332, -inf
    %480 = vmax.xlane.f32.xlu0 %v479
    %v481 = vpop.xlane.xlu0 %480
    %v482 = vsel %vm469, %v197, -inf
    %483 = vmax.xlane.f32.xlu0 %v482
    %v484 = vpop.xlane.xlu0 %483
    %v485 = vsel %vm469, %v333, -inf
    %486 = vmax.xlane.f32.xlu0 %v485
    %v487 = vpop.xlane.xlu0 %486
    %v488 = vsel %vm469, %v198, -inf
    %489 = vmax.xlane.f32.xlu0 %v488
    %v490 = vpop.xlane.xlu0 %489
    %v491 = vsel %vm469, %v334, -inf
    %492 = vmax.xlane.f32.xlu0 %v491
    %v493 = vpop.xlane.xlu0 %492
    %v494 = vsel %vm469, %v199, -inf
    %495 = vmax.xlane.f32.xlu0 %v494
    %v496 = vpop.xlane.xlu0 %495
    %v497 = vsel %vm469, %v335, -inf
    %498 = vmax.xlane.f32.xlu0 %v497
    %v499 = vpop.xlane.xlu0 %498
    %v500 = vsel %vm469, %v200, -inf
    %501 = vmax.xlane.f32.xlu0 %v500
    %v502 = vpop.xlane.xlu0 %501
    %v503 = vsel %vm469, %v336, -inf
    %504 = vmax.xlane.f32.xlu0 %v503
    %v505 = vpop.xlane.xlu0 %504
    %v506 = vsel %vm469, %v201, -inf
    %507 = vmax.xlane.f32.xlu0 %v506
    %v508 = vpop.xlane.xlu0 %507
    %v509 = vsel %vm469, %v337, -inf
    %510 = vmax.xlane.f32.xlu0 %v509
    %v511 = vpop.xlane.xlu0 %510
    %v512 = vsel %vm469, %v202, -inf
    %513 = vmax.xlane.f32.xlu0 %v512
    %v514 = vpop.xlane.xlu0 %513
    %v515 = vsel %vm469, %v338, -inf
    %516 = vmax.xlane.f32.xlu0 %v515
    %v517 = vpop.xlane.xlu0 %516
    %vm518 = vcmask 130112
    %v519 = vsel %vm518, %v195, -inf
    %520 = vmax.xlane.f32.xlu0 %v519
    %v521 = vpop.xlane.xlu0 %520
    %v522 = vsel %vm518, %v331, -inf
    %523 = vmax.xlane.f32.xlu0 %v522
    %v524 = vpop.xlane.xlu0 %523
    %v525 = vsel %vm518, %v196, -inf
    %526 = vmax.xlane.f32.xlu0 %v525
    %v527 = vpop.xlane.xlu0 %526
    %v528 = vsel %vm518, %v332, -inf
    %529 = vmax.xlane.f32.xlu0 %v528
    %v530 = vpop.xlane.xlu0 %529
    %v531 = vsel %vm518, %v197, -inf
    %532 = vmax.xlane.f32.xlu0 %v531
    %v533 = vpop.xlane.xlu0 %532
    %v534 = vsel %vm518, %v333, -inf
    %535 = vmax.xlane.f32.xlu0 %v534
    %v536 = vpop.xlane.xlu0 %535
    %v537 = vsel %vm518, %v198, -inf
    %538 = vmax.xlane.f32.xlu0 %v537
    %v539 = vpop.xlane.xlu0 %538
    %v540 = vsel %vm518, %v334, -inf
    %541 = vmax.xlane.f32.xlu0 %v540
    %v542 = vpop.xlane.xlu0 %541
    %v543 = vsel %vm518, %v199, -inf
    %544 = vmax.xlane.f32.xlu0 %v543
    %v545 = vpop.xlane.xlu0 %544
    %v546 = vsel %vm518, %v335, -inf
    %547 = vmax.xlane.f32.xlu0 %v546
    %v548 = vpop.xlane.xlu0 %547
    %v549 = vsel %vm518, %v200, -inf
    %550 = vmax.xlane.f32.xlu0 %v549
    %v551 = vpop.xlane.xlu0 %550
    %v552 = vsel %vm518, %v336, -inf
    %553 = vmax.xlane.f32.xlu0 %v552
    %v554 = vpop.xlane.xlu0 %553
    %v555 = vsel %vm518, %v201, -inf
    %556 = vmax.xlane.f32.xlu0 %v555
    %v557 = vpop.xlane.xlu0 %556
    %v558 = vsel %vm518, %v337, -inf
    %559 = vmax.xlane.f32.xlu0 %v558
    %v560 = vpop.xlane.xlu0 %559
    %v561 = vsel %vm518, %v202, -inf
    %562 = vmax.xlane.f32.xlu0 %v561
    %v563 = vpop.xlane.xlu0 %562
    %v564 = vsel %vm518, %v338, -inf
    %565 = vmax.xlane.f32.xlu0 %v564
    %v566 = vpop.xlane.xlu0 %565
    %v583 = vlaneseq
    %v584 = vand.u32 %v583, 127
    %v585 = vlaneseq
    %v586 = vshrl.u32 %v585, 7
    %v587 = vsub.s32 %v584, %v586
    %v588 = vrot.slane %v472, %v587
    %v589 = vadd.s32 %v584, 4294967288
    %v590 = vlaneseq
    %v591 = vshrl.u32 %v590, 7
    %v592 = vsub.s32 %v589, %v591
    %v593 = vrot.slane %v475, %v592
    %v594 = vsel %vm518, %v593, %v588
    %v595 = vlaneseq
    %v596 = vshrl.u32 %v595, 7
    %v597 = vsub.s32 %v584, %v596
    %v598 = vrot.slane %v478, %v597
    %v599 = vlaneseq
    %v600 = vshrl.u32 %v599, 7
    %v601 = vsub.s32 %v589, %v600
    %v602 = vrot.slane %v481, %v601
    %v603 = vsel %vm518, %v602, %v598
    %v604 = vlaneseq
    %v605 = vshrl.u32 %v604, 7
    %v606 = vsub.s32 %v584, %v605
    %v607 = vrot.slane %v484, %v606
    %v608 = vlaneseq
    %v609 = vshrl.u32 %v608, 7
    %v610 = vsub.s32 %v589, %v609
    %v611 = vrot.slane %v487, %v610
    %v612 = vsel %vm518, %v611, %v607
    %v613 = vlaneseq
    %v614 = vshrl.u32 %v613, 7
    %v615 = vsub.s32 %v584, %v614
    %v616 = vrot.slane %v490, %v615
    %v617 = vlaneseq
    %v618 = vshrl.u32 %v617, 7
    %v619 = vsub.s32 %v589, %v618
    %v620 = vrot.slane %v493, %v619
    %v621 = vsel %vm518, %v620, %v616
    %v622 = vlaneseq
    %v623 = vshrl.u32 %v622, 7
    %v624 = vsub.s32 %v584, %v623
    %v625 = vrot.slane %v496, %v624
    %v626 = vlaneseq
    %v627 = vshrl.u32 %v626, 7
    %v628 = vsub.s32 %v589, %v627
    %v629 = vrot.slane %v499, %v628
    %v630 = vsel %vm518, %v629, %v625
    %v631 = vlaneseq
    %v632 = vshrl.u32 %v631, 7
    %v633 = vsub.s32 %v584, %v632
    %v634 = vrot.slane %v502, %v633
    %v635 = vlaneseq
    %v636 = vshrl.u32 %v635, 7
    %v637 = vsub.s32 %v589, %v636
    %v638 = vrot.slane %v505, %v637
    %v639 = vsel %vm518, %v638, %v634
    %v640 = vlaneseq
    %v641 = vshrl.u32 %v640, 7
    %v642 = vsub.s32 %v584, %v641
    %v643 = vrot.slane %v508, %v642
    %v644 = vlaneseq
    %v645 = vshrl.u32 %v644, 7
    %v646 = vsub.s32 %v589, %v645
    %v647 = vrot.slane %v511, %v646
    %v648 = vsel %vm518, %v647, %v643
    %v649 = vlaneseq
    %v650 = vshrl.u32 %v649, 7
    %v651 = vsub.s32 %v584, %v650
    %v652 = vrot.slane %v514, %v651
    %v653 = vlaneseq
    %v654 = vshrl.u32 %v653, 7
    %v655 = vsub.s32 %v589, %v654
    %v656 = vrot.slane %v517, %v655
    %v657 = vsel %vm518, %v656, %v652
    %v682 = vlaneseq
    %v683 = vshrl.u32 %v682, 7
    %v684 = vsub.s32 %v584, %v683
    %v685 = vrot.slane %v521, %v684
    %v686 = vlaneseq
    %v687 = vshrl.u32 %v686, 7
    %v688 = vsub.s32 %v589, %v687
    %v689 = vrot.slane %v524, %v688
    %v690 = vsel %vm518, %v689, %v685
    %v691 = vlaneseq
    %v692 = vshrl.u32 %v691, 7
    %v693 = vsub.s32 %v584, %v692
    %v694 = vrot.slane %v527, %v693
    %v695 = vlaneseq
    %v696 = vshrl.u32 %v695, 7
    %v697 = vsub.s32 %v589, %v696
    %v698 = vrot.slane %v530, %v697
    %v699 = vsel %vm518, %v698, %v694
    %v700 = vlaneseq
    %v701 = vshrl.u32 %v700, 7
    %v702 = vsub.s32 %v584, %v701
    %v703 = vrot.slane %v533, %v702
    %v704 = vlaneseq
    %v705 = vshrl.u32 %v704, 7
    %v706 = vsub.s32 %v589, %v705
    %v707 = vrot.slane %v536, %v706
    %v708 = vsel %vm518, %v707, %v703
    %v709 = vlaneseq
    %v710 = vshrl.u32 %v709, 7
    %v711 = vsub.s32 %v584, %v710
    %v712 = vrot.slane %v539, %v711
    %v713 = vlaneseq
    %v714 = vshrl.u32 %v713, 7
    %v715 = vsub.s32 %v589, %v714
    %v716 = vrot.slane %v542, %v715
    %v717 = vsel %vm518, %v716, %v712
    %v718 = vlaneseq
    %v719 = vshrl.u32 %v718, 7
    %v720 = vsub.s32 %v584, %v719
    %v721 = vrot.slane %v545, %v720
    %v722 = vlaneseq
    %v723 = vshrl.u32 %v722, 7
    %v724 = vsub.s32 %v589, %v723
    %v725 = vrot.slane %v548, %v724
    %v726 = vsel %vm518, %v725, %v721
    %v727 = vlaneseq
    %v728 = vshrl.u32 %v727, 7
    %v729 = vsub.s32 %v584, %v728
    %v730 = vrot.slane %v551, %v729
    %v731 = vlaneseq
    %v732 = vshrl.u32 %v731, 7
    %v733 = vsub.s32 %v589, %v732
    %v734 = vrot.slane %v554, %v733
    %v735 = vsel %vm518, %v734, %v730
    %v736 = vlaneseq
    %v737 = vshrl.u32 %v736, 7
    %v738 = vsub.s32 %v584, %v737
    %v739 = vrot.slane %v557, %v738
    %v740 = vlaneseq
    %v741 = vshrl.u32 %v740, 7
    %v742 = vsub.s32 %v589, %v741
    %v743 = vrot.slane %v560, %v742
    %v744 = vsel %vm518, %v743, %v739
    %v745 = vlaneseq
    %v746 = vshrl.u32 %v745, 7
    %v747 = vsub.s32 %v584, %v746
    %v748 = vrot.slane %v563, %v747
    %v749 = vlaneseq
    %v750 = vshrl.u32 %v749, 7
    %v751 = vsub.s32 %v589, %v750
    %v752 = vrot.slane %v566, %v751
    %v753 = vsel %vm518, %v752, %v748
    %vm762 = vcmask 1040384
    %v763 = vsel %vm762, %v594, %v690
    %v764 = vsel %vm762, %v603, %v699
    %v765 = vsel %vm762, %v612, %v708
    %v766 = vsel %vm762, %v621, %v717
    %v767 = vsel %vm762, %v630, %v726
    %v768 = vsel %vm762, %v639, %v735
    %v769 = vsel %vm762, %v648, %v744
    %v770 = vsel %vm762, %v657, %v753
    %vm771 = vcmask 58368
    %v772 = vsel %vm771, %v763, -inf
    %773 = vmax.xlane.f32.xlu0 %v772
    %v774 = vpop.xlane.xlu0 %773
    %v775 = vsel %vm771, %v764, -inf
    %776 = vmax.xlane.f32.xlu0 %v775
    %v777 = vpop.xlane.xlu0 %776
    %v778 = vsel %vm771, %v765, -inf
    %779 = vmax.xlane.f32.xlu0 %v778
    %v780 = vpop.xlane.xlu0 %779
    %v781 = vsel %vm771, %v766, -inf
    %782 = vmax.xlane.f32.xlu0 %v781
    %v783 = vpop.xlane.xlu0 %782
    %v784 = vsel %vm771, %v767, -inf
    %785 = vmax.xlane.f32.xlu0 %v784
    %v786 = vpop.xlane.xlu0 %785
    %v787 = vsel %vm771, %v768, -inf
    %788 = vmax.xlane.f32.xlu0 %v787
    %v789 = vpop.xlane.xlu0 %788
    %v790 = vsel %vm771, %v769, -inf
    %791 = vmax.xlane.f32.xlu0 %v790
    %v792 = vpop.xlane.xlu0 %791
    %v793 = vsel %vm771, %v770, -inf
    %794 = vmax.xlane.f32.xlu0 %v793
    %v795 = vpop.xlane.xlu0 %794
    %vm796 = vcmask 123968
    %v797 = vsel %vm796, %v763, -inf
    %798 = vmax.xlane.f32.xlu0 %v797
    %v799 = vpop.xlane.xlu0 %798
    %v800 = vsel %vm796, %v764, -inf
    %801 = vmax.xlane.f32.xlu0 %v800
    %v802 = vpop.xlane.xlu0 %801
    %v803 = vsel %vm796, %v765, -inf
    %804 = vmax.xlane.f32.xlu0 %v803
    %v805 = vpop.xlane.xlu0 %804
    %v806 = vsel %vm796, %v766, -inf
    %807 = vmax.xlane.f32.xlu0 %v806
    %v808 = vpop.xlane.xlu0 %807
    %v809 = vsel %vm796, %v767, -inf
    %810 = vmax.xlane.f32.xlu0 %v809
    %v811 = vpop.xlane.xlu0 %810
    %v812 = vsel %vm796, %v768, -inf
    %813 = vmax.xlane.f32.xlu0 %v812
    %v814 = vpop.xlane.xlu0 %813
    %v815 = vsel %vm796, %v769, -inf
    %816 = vmax.xlane.f32.xlu0 %v815
    %v817 = vpop.xlane.xlu0 %816
    %v818 = vsel %vm796, %v770, -inf
    %819 = vmax.xlane.f32.xlu0 %v818
    %v820 = vpop.xlane.xlu0 %819
    %v829 = vlaneseq
    %v830 = vshrl.u32 %v829, 7
    %v831 = vsub.s32 %v584, %v830
    %v832 = vrot.slane %v774, %v831
    %v833 = vlaneseq
    %v834 = vshrl.u32 %v833, 7
    %v835 = vsub.s32 %v584, %v834
    %v836 = vrot.slane %v777, %v835
    %v837 = vlaneseq
    %v838 = vshrl.u32 %v837, 7
    %v839 = vsub.s32 %v584, %v838
    %v840 = vrot.slane %v780, %v839
    %v841 = vlaneseq
    %v842 = vshrl.u32 %v841, 7
    %v843 = vsub.s32 %v584, %v842
    %v844 = vrot.slane %v783, %v843
    %v845 = vlaneseq
    %v846 = vshrl.u32 %v845, 7
    %v847 = vsub.s32 %v584, %v846
    %v848 = vrot.slane %v786, %v847
    %v849 = vlaneseq
    %v850 = vshrl.u32 %v849, 7
    %v851 = vsub.s32 %v584, %v850
    %v852 = vrot.slane %v789, %v851
    %v853 = vlaneseq
    %v854 = vshrl.u32 %v853, 7
    %v855 = vsub.s32 %v584, %v854
    %v856 = vrot.slane %v792, %v855
    %v857 = vlaneseq
    %v858 = vshrl.u32 %v857, 7
    %v859 = vsub.s32 %v584, %v858
    %v860 = vrot.slane %v795, %v859
    %v877 = vlaneseq
    %v878 = vshrl.u32 %v877, 7
    %v879 = vsub.s32 %v584, %v878
    %v880 = vrot.slane %v799, %v879
    %v881 = vlaneseq
    %v882 = vshrl.u32 %v881, 7
    %v883 = vsub.s32 %v584, %v882
    %v884 = vrot.slane %v802, %v883
    %v885 = vlaneseq
    %v886 = vshrl.u32 %v885, 7
    %v887 = vsub.s32 %v584, %v886
    %v888 = vrot.slane %v805, %v887
    %v889 = vlaneseq
    %v890 = vshrl.u32 %v889, 7
    %v891 = vsub.s32 %v584, %v890
    %v892 = vrot.slane %v808, %v891
    %v893 = vlaneseq
    %v894 = vshrl.u32 %v893, 7
    %v895 = vsub.s32 %v584, %v894
    %v896 = vrot.slane %v811, %v895
    %v897 = vlaneseq
    %v898 = vshrl.u32 %v897, 7
    %v899 = vsub.s32 %v584, %v898
    %v900 = vrot.slane %v814, %v899
    %v901 = vlaneseq
    %v902 = vshrl.u32 %v901, 7
    %v903 = vsub.s32 %v584, %v902
    %v904 = vrot.slane %v817, %v903
    %v905 = vlaneseq
    %v906 = vshrl.u32 %v905, 7
    %v907 = vsub.s32 %v584, %v906
    %v908 = vrot.slane %v820, %v907
    %v917 = vsel %vm762, %v832, %v880
    %v918 = vsel %vm762, %v836, %v884
    %v919 = vsel %vm762, %v840, %v888
    %v920 = vsel %vm762, %v844, %v892
    %v921 = vsel %vm762, %v848, %v896
    %v922 = vsel %vm762, %v852, %v900
    %v923 = vsel %vm762, %v856, %v904
    %v924 = vsel %vm762, %v860, %v908
    %v925 = vcombine.low %v917, %v919
    %v927 = vunpack.c.l.s4 1983009808
    %v928 = vunpack.c.0.s8 %v927
    %v929 = vlaneseq
    %v930 = vshrl.u32 %v929, 7
    %v931 = vsub.s32 %v928, %v930
    %v932 = vrot.slane %v925, %v931
    %v933 = vcombine.low %v918, %v920
    %v935 = vunpack.c.l.s4 1983009808
    %v936 = vunpack.c.0.s8 %v935
    %v937 = vlaneseq
    %v938 = vshrl.u32 %v937, 7
    %v939 = vsub.s32 %v936, %v938
    %v940 = vrot.slane %v933, %v939
    %v941 = vcombine.low %v921, %v923
    %v943 = vunpack.c.l.s4 1983009808
    %v944 = vunpack.c.0.s8 %v943
    %v945 = vlaneseq
    %v946 = vshrl.u32 %v945, 7
    %v947 = vsub.s32 %v944, %v946
    %v948 = vrot.slane %v941, %v947
    %v949 = vcombine.low %v922, %v924
    %v951 = vunpack.c.l.s4 1983009808
    %v952 = vunpack.c.0.s8 %v951
    %v953 = vlaneseq
    %v954 = vshrl.u32 %v953, 7
    %v955 = vsub.s32 %v952, %v954
    %v956 = vrot.slane %v949, %v955
    %v957 = vcombine.low %v932, %v940
    %v959 = vunpack.c.l.s4 1934713408
    %v960 = vunpack.c.0.s8 %v959
    %v961 = vlaneseq
    %v962 = vshrl.u32 %v961, 7
    %v963 = vsub.s32 %v960, %v962
    %v964 = vrot.slane %v957, %v963
    %v965 = vcombine.low %v948, %v956
    %v967 = vunpack.c.l.s4 1934713408
    %v968 = vunpack.c.0.s8 %v967
    %v969 = vlaneseq
    %v970 = vshrl.u32 %v969, 7
    %v971 = vsub.s32 %v968, %v970
    %v972 = vrot.slane %v965, %v971
    %v973 = vcombine.low %v964, %v972
    %v974 = vcombine.high %v964, %v972
    %976 = vrot.lane.b32.xlu0 %v974, 2
    %v977 = vpop.permute.xlu0 %976
    %vm979 = vcmask 15360
    %v980 = vsel %vm979, %v973, %v977
    %982 = vrot.lane.b32.xlu0 %v980, 1
    %v983 = vpop.permute.xlu0 %982
    %vm985 = vcmask 39944
    %986 = vst.msk [vmem:[#allocation5] sm:$0xff] %vm985, %v983
    %vm987 = vcmask 39936
    %v988 = vsel %vm987, %v195, -inf
    %989 = vmax.xlane.f32.xlu0 %v988
    %v990 = vpop.xlane.xlu0 %989
    %v991 = vsel %vm987, %v331, -inf
    %992 = vmax.xlane.f32.xlu0 %v991
    %v993 = vpop.xlane.xlu0 %992
    %v994 = vsel %vm987, %v196, -inf
    %995 = vmax.xlane.f32.xlu0 %v994
    %v996 = vpop.xlane.xlu0 %995
    %v997 = vsel %vm987, %v332, -inf
    %998 = vmax.xlane.f32.xlu0 %v997
    %v999 = vpop.xlane.xlu0 %998
    %v1000 = vsel %vm987, %v197, -inf
    %1001 = vmax.xlane.f32.xlu0 %v1000
    %v1002 = vpop.xlane.xlu0 %1001
    %v1003 = vsel %vm987, %v333, -inf
    %1004 = vmax.xlane.f32.xlu0 %v1003
    %v1005 = vpop.xlane.xlu0 %1004
    %v1006 = vsel %vm987, %v198, -inf
    %1007 = vmax.xlane.f32.xlu0 %v1006
    %v1008 = vpop.xlane.xlu0 %1007
    %v1009 = vsel %vm987, %v334, -inf
    %1010 = vmax.xlane.f32.xlu0 %v1009
    %v1011 = vpop.xlane.xlu0 %1010
    %v1012 = vsel %vm987, %v199, -inf
    %1013 = vmax.xlane.f32.xlu0 %v1012
    %v1014 = vpop.xlane.xlu0 %1013
    %v1015 = vsel %vm987, %v335, -inf
    %1016 = vmax.xlane.f32.xlu0 %v1015
    %v1017 = vpop.xlane.xlu0 %1016
    %v1018 = vsel %vm987, %v200, -inf
    %1019 = vmax.xlane.f32.xlu0 %v1018
    %v1020 = vpop.xlane.xlu0 %1019
    %v1021 = vsel %vm987, %v336, -inf
    %1022 = vmax.xlane.f32.xlu0 %v1021
    %v1023 = vpop.xlane.xlu0 %1022
    %v1024 = vsel %vm987, %v201, -inf
    %1025 = vmax.xlane.f32.xlu0 %v1024
    %v1026 = vpop.xlane.xlu0 %1025
    %v1027 = vsel %vm987, %v337, -inf
    %1028 = vmax.xlane.f32.xlu0 %v1027
    %v1029 = vpop.xlane.xlu0 %1028
    %v1030 = vsel %vm987, %v202, -inf
    %1031 = vmax.xlane.f32.xlu0 %v1030
    %v1032 = vpop.xlane.xlu0 %1031
    %v1033 = vsel %vm987, %v338, -inf
    %1034 = vmax.xlane.f32.xlu0 %v1033
    %v1035 = vpop.xlane.xlu0 %1034
    %vm1036 = vcmask 89128
    %v1037 = vsel %vm1036, %v195, -inf
    %1038 = vmax.xlane.f32.xlu0 %v1037
    %v1039 = vpop.xlane.xlu0 %1038
    %v1040 = vsel %vm1036, %v331, -inf
    %1041 = vmax.xlane.f32.xlu0 %v1040
    %v1042 = vpop.xlane.xlu0 %1041
    %v1043 = vsel %vm1036, %v196, -inf
    %1044 = vmax.xlane.f32.xlu0 %v1043
    %v1045 = vpop.xlane.xlu0 %1044
    %v1046 = vsel %vm1036, %v332, -inf
    %1047 = vmax.xlane.f32.xlu0 %v1046
    %v1048 = vpop.xlane.xlu0 %1047
    %v1049 = vsel %vm1036, %v197, -inf
    %1050 = vmax.xlane.f32.xlu0 %v1049
    %v1051 = vpop.xlane.xlu0 %1050
    %v1052 = vsel %vm1036, %v333, -inf
    %1053 = vmax.xlane.f32.xlu0 %v1052
    %v1054 = vpop.xlane.xlu0 %1053
    %v1055 = vsel %vm1036, %v198, -inf
    %1056 = vmax.xlane.f32.xlu0 %v1055
    %v1057 = vpop.xlane.xlu0 %1056
    %v1058 = vsel %vm1036, %v334, -inf
    %1059 = vmax.xlane.f32.xlu0 %v1058
    %v1060 = vpop.xlane.xlu0 %1059
    %v1061 = vsel %vm1036, %v199, -inf
    %1062 = vmax.xlane.f32.xlu0 %v1061
    %v1063 = vpop.xlane.xlu0 %1062
    %v1064 = vsel %vm1036, %v335, -inf
    %1065 = vmax.xlane.f32.xlu0 %v1064
    %v1066 = vpop.xlane.xlu0 %1065
    %v1067 = vsel %vm1036, %v200, -inf
    %1068 = vmax.xlane.f32.xlu0 %v1067
    %v1069 = vpop.xlane.xlu0 %1068
    %v1070 = vsel %vm1036, %v336, -inf
    %1071 = vmax.xlane.f32.xlu0 %v1070
    %v1072 = vpop.xlane.xlu0 %1071
    %v1073 = vsel %vm1036, %v201, -inf
    %1074 = vmax.xlane.f32.xlu0 %v1073
    %v1075 = vpop.xlane.xlu0 %1074
    %v1076 = vsel %vm1036, %v337, -inf
    %1077 = vmax.xlane.f32.xlu0 %v1076
    %v1078 = vpop.xlane.xlu0 %1077
    %v1079 = vsel %vm1036, %v202, -inf
    %1080 = vmax.xlane.f32.xlu0 %v1079
    %v1081 = vpop.xlane.xlu0 %1080
    %v1082 = vsel %vm1036, %v338, -inf
    %1083 = vmax.xlane.f32.xlu0 %v1082
    %v1084 = vpop.xlane.xlu0 %1083
    %vm1085 = vcmask 130136
    %v1086 = vsel %vm1085, %v195, -inf
    %1087 = vmax.xlane.f32.xlu0 %v1086
    %v1088 = vpop.xlane.xlu0 %1087
    %v1089 = vsel %vm1085, %v331, -inf
    %1090 = vmax.xlane.f32.xlu0 %v1089
    %v1091 = vpop.xlane.xlu0 %1090
    %v1092 = vsel %vm1085, %v196, -inf
    %1093 = vmax.xlane.f32.xlu0 %v1092
    %v1094 = vpop.xlane.xlu0 %1093
    %v1095 = vsel %vm1085, %v332, -inf
    %1096 = vmax.xlane.f32.xlu0 %v1095
    %v1097 = vpop.xlane.xlu0 %1096
    %v1098 = vsel %vm1085, %v197, -inf
    %1099 = vmax.xlane.f32.xlu0 %v1098
    %v1100 = vpop.xlane.xlu0 %1099
    %v1101 = vsel %vm1085, %v333, -inf
    %1102 = vmax.xlane.f32.xlu0 %v1101
    %v1103 = vpop.xlane.xlu0 %1102
    %v1104 = vsel %vm1085, %v198, -inf
    %1105 = vmax.xlane.f32.xlu0 %v1104
    %v1106 = vpop.xlane.xlu0 %1105
    %v1107 = vsel %vm1085, %v334, -inf
    %1108 = vmax.xlane.f32.xlu0 %v1107
    %v1109 = vpop.xlane.xlu0 %1108
    %v1110 = vsel %vm1085, %v199, -inf
    %1111 = vmax.xlane.f32.xlu0 %v1110
    %v1112 = vpop.xlane.xlu0 %1111
    %v1113 = vsel %vm1085, %v335, -inf
    %1114 = vmax.xlane.f32.xlu0 %v1113
    %v1115 = vpop.xlane.xlu0 %1114
    %v1116 = vsel %vm1085, %v200, -inf
    %1117 = vmax.xlane.f32.xlu0 %v1116
    %v1118 = vpop.xlane.xlu0 %1117
    %v1119 = vsel %vm1085, %v336, -inf
    %1120 = vmax.xlane.f32.xlu0 %v1119
    %v1121 = vpop.xlane.xlu0 %1120
    %v1122 = vsel %vm1085, %v201, -inf
    %1123 = vmax.xlane.f32.xlu0 %v1122
    %v1124 = vpop.xlane.xlu0 %1123
    %v1125 = vsel %vm1085, %v337, -inf
    %1126 = vmax.xlane.f32.xlu0 %v1125
    %v1127 = vpop.xlane.xlu0 %1126
    %v1128 = vsel %vm1085, %v202, -inf
    %1129 = vmax.xlane.f32.xlu0 %v1128
    %v1130 = vpop.xlane.xlu0 %1129
    %v1131 = vsel %vm1085, %v338, -inf
    %1132 = vmax.xlane.f32.xlu0 %v1131
    %v1133 = vpop.xlane.xlu0 %1132
    %v1150 = vlaneseq
    %v1151 = vshrl.u32 %v1150, 7
    %v1152 = vsub.s32 %v584, %v1151
    %v1153 = vrot.slane %v990, %v1152
    %v1154 = vlaneseq
    %v1155 = vshrl.u32 %v1154, 7
    %v1156 = vsub.s32 %v589, %v1155
    %v1157 = vrot.slane %v993, %v1156
    %v1158 = vsel %vm518, %v1157, %v1153
    %v1159 = vlaneseq
    %v1160 = vshrl.u32 %v1159, 7
    %v1161 = vsub.s32 %v584, %v1160
    %v1162 = vrot.slane %v996, %v1161
    %v1163 = vlaneseq
    %v1164 = vshrl.u32 %v1163, 7
    %v1165 = vsub.s32 %v589, %v1164
    %v1166 = vrot.slane %v999, %v1165
    %v1167 = vsel %vm518, %v1166, %v1162
    %v1168 = vlaneseq
    %v1169 = vshrl.u32 %v1168, 7
    %v1170 = vsub.s32 %v584, %v1169
    %v1171 = vrot.slane %v1002, %v1170
    %v1172 = vlaneseq
    %v1173 = vshrl.u32 %v1172, 7
    %v1174 = vsub.s32 %v589, %v1173
    %v1175 = vrot.slane %v1005, %v1174
    %v1176 = vsel %vm518, %v1175, %v1171
    %v1177 = vlaneseq
    %v1178 = vshrl.u32 %v1177, 7
    %v1179 = vsub.s32 %v584, %v1178
    %v1180 = vrot.slane %v1008, %v1179
    %v1181 = vlaneseq
    %v1182 = vshrl.u32 %v1181, 7
    %v1183 = vsub.s32 %v589, %v1182
    %v1184 = vrot.slane %v1011, %v1183
    %v1185 = vsel %vm518, %v1184, %v1180
    %v1186 = vlaneseq
    %v1187 = vshrl.u32 %v1186, 7
    %v1188 = vsub.s32 %v584, %v1187
    %v1189 = vrot.slane %v1014, %v1188
    %v1190 = vlaneseq
    %v1191 = vshrl.u32 %v1190, 7
    %v1192 = vsub.s32 %v589, %v1191
    %v1193 = vrot.slane %v1017, %v1192
    %v1194 = vsel %vm518, %v1193, %v1189
    %v1195 = vlaneseq
    %v1196 = vshrl.u32 %v1195, 7
    %v1197 = vsub.s32 %v584, %v1196
    %v1198 = vrot.slane %v1020, %v1197
    %v1199 = vlaneseq
    %v1200 = vshrl.u32 %v1199, 7
    %v1201 = vsub.s32 %v589, %v1200
    %v1202 = vrot.slane %v1023, %v1201
    %v1203 = vsel %vm518, %v1202, %v1198
    %v1204 = vlaneseq
    %v1205 = vshrl.u32 %v1204, 7
    %v1206 = vsub.s32 %v584, %v1205
    %v1207 = vrot.slane %v1026, %v1206
    %v1208 = vlaneseq
    %v1209 = vshrl.u32 %v1208, 7
    %v1210 = vsub.s32 %v589, %v1209
    %v1211 = vrot.slane %v1029, %v1210
    %v1212 = vsel %vm518, %v1211, %v1207
    %v1213 = vlaneseq
    %v1214 = vshrl.u32 %v1213, 7
    %v1215 = vsub.s32 %v584, %v1214
    %v1216 = vrot.slane %v1032, %v1215
    %v1217 = vlaneseq
    %v1218 = vshrl.u32 %v1217, 7
    %v1219 = vsub.s32 %v589, %v1218
    %v1220 = vrot.slane %v1035, %v1219
    %v1221 = vsel %vm518, %v1220, %v1216
    %v1246 = vlaneseq
    %v1247 = vshrl.u32 %v1246, 7
    %v1248 = vsub.s32 %v584, %v1247
    %v1249 = vrot.slane %v1039, %v1248
    %v1250 = vlaneseq
    %v1251 = vshrl.u32 %v1250, 7
    %v1252 = vsub.s32 %v589, %v1251
    %v1253 = vrot.slane %v1042, %v1252
    %v1254 = vsel %vm518, %v1253, %v1249
    %v1255 = vlaneseq
    %v1256 = vshrl.u32 %v1255, 7
    %v1257 = vsub.s32 %v584, %v1256
    %v1258 = vrot.slane %v1045, %v1257
    %v1259 = vlaneseq
    %v1260 = vshrl.u32 %v1259, 7
    %v1261 = vsub.s32 %v589, %v1260
    %v1262 = vrot.slane %v1048, %v1261
    %v1263 = vsel %vm518, %v1262, %v1258
    %v1264 = vlaneseq
    %v1265 = vshrl.u32 %v1264, 7
    %v1266 = vsub.s32 %v584, %v1265
    %v1267 = vrot.slane %v1051, %v1266
    %v1268 = vlaneseq
    %v1269 = vshrl.u32 %v1268, 7
    %v1270 = vsub.s32 %v589, %v1269
    %v1271 = vrot.slane %v1054, %v1270
    %v1272 = vsel %vm518, %v1271, %v1267
    %v1273 = vlaneseq
    %v1274 = vshrl.u32 %v1273, 7
    %v1275 = vsub.s32 %v584, %v1274
    %v1276 = vrot.slane %v1057, %v1275
    %v1277 = vlaneseq
    %v1278 = vshrl.u32 %v1277, 7
    %v1279 = vsub.s32 %v589, %v1278
    %v1280 = vrot.slane %v1060, %v1279
    %v1281 = vsel %vm518, %v1280, %v1276
    %v1282 = vlaneseq
    %v1283 = vshrl.u32 %v1282, 7
    %v1284 = vsub.s32 %v584, %v1283
    %v1285 = vrot.slane %v1063, %v1284
    %v1286 = vlaneseq
    %v1287 = vshrl.u32 %v1286, 7
    %v1288 = vsub.s32 %v589, %v1287
    %v1289 = vrot.slane %v1066, %v1288
    %v1290 = vsel %vm518, %v1289, %v1285
    %v1291 = vlaneseq
    %v1292 = vshrl.u32 %v1291, 7
    %v1293 = vsub.s32 %v584, %v1292
    %v1294 = vrot.slane %v1069, %v1293
    %v1295 = vlaneseq
    %v1296 = vshrl.u32 %v1295, 7
    %v1297 = vsub.s32 %v589, %v1296
    %v1298 = vrot.slane %v1072, %v1297
    %v1299 = vsel %vm518, %v1298, %v1294
    %v1300 = vlaneseq
    %v1301 = vshrl.u32 %v1300, 7
    %v1302 = vsub.s32 %v584, %v1301
    %v1303 = vrot.slane %v1075, %v1302
    %v1304 = vlaneseq
    %v1305 = vshrl.u32 %v1304, 7
    %v1306 = vsub.s32 %v589, %v1305
    %v1307 = vrot.slane %v1078, %v1306
    %v1308 = vsel %vm518, %v1307, %v1303
    %v1309 = vlaneseq
    %v1310 = vshrl.u32 %v1309, 7
    %v1311 = vsub.s32 %v584, %v1310
    %v1312 = vrot.slane %v1081, %v1311
    %v1313 = vlaneseq
    %v1314 = vshrl.u32 %v1313, 7
    %v1315 = vsub.s32 %v589, %v1314
    %v1316 = vrot.slane %v1084, %v1315
    %v1317 = vsel %vm518, %v1316, %v1312
    %v1342 = vlaneseq
    %v1343 = vshrl.u32 %v1342, 7
    %v1344 = vsub.s32 %v584, %v1343
    %v1345 = vrot.slane %v1088, %v1344
    %v1346 = vlaneseq
    %v1347 = vshrl.u32 %v1346, 7
    %v1348 = vsub.s32 %v589, %v1347
    %v1349 = vrot.slane %v1091, %v1348
    %v1350 = vsel %vm518, %v1349, %v1345
    %v1351 = vlaneseq
    %v1352 = vshrl.u32 %v1351, 7
    %v1353 = vsub.s32 %v584, %v1352
    %v1354 = vrot.slane %v1094, %v1353
    %v1355 = vlaneseq
    %v1356 = vshrl.u32 %v1355, 7
    %v1357 = vsub.s32 %v589, %v1356
    %v1358 = vrot.slane %v1097, %v1357
    %v1359 = vsel %vm518, %v1358, %v1354
    %v1360 = vlaneseq
    %v1361 = vshrl.u32 %v1360, 7
    %v1362 = vsub.s32 %v584, %v1361
    %v1363 = vrot.slane %v1100, %v1362
    %v1364 = vlaneseq
    %v1365 = vshrl.u32 %v1364, 7
    %v1366 = vsub.s32 %v589, %v1365
    %v1367 = vrot.slane %v1103, %v1366
    %v1368 = vsel %vm518, %v1367, %v1363
    %v1369 = vlaneseq
    %v1370 = vshrl.u32 %v1369, 7
    %v1371 = vsub.s32 %v584, %v1370
    %v1372 = vrot.slane %v1106, %v1371
    %v1373 = vlaneseq
    %v1374 = vshrl.u32 %v1373, 7
    %v1375 = vsub.s32 %v589, %v1374
    %v1376 = vrot.slane %v1109, %v1375
    %v1377 = vsel %vm518, %v1376, %v1372
    %v1378 = vlaneseq
    %v1379 = vshrl.u32 %v1378, 7
    %v1380 = vsub.s32 %v584, %v1379
    %v1381 = vrot.slane %v1112, %v1380
    %v1382 = vlaneseq
    %v1383 = vshrl.u32 %v1382, 7
    %v1384 = vsub.s32 %v589, %v1383
    %v1385 = vrot.slane %v1115, %v1384
    %v1386 = vsel %vm518, %v1385, %v1381
    %v1387 = vlaneseq
    %v1388 = vshrl.u32 %v1387, 7
    %v1389 = vsub.s32 %v584, %v1388
    %v1390 = vrot.slane %v1118, %v1389
    %v1391 = vlaneseq
    %v1392 = vshrl.u32 %v1391, 7
    %v1393 = vsub.s32 %v589, %v1392
    %v1394 = vrot.slane %v1121, %v1393
    %v1395 = vsel %vm518, %v1394, %v1390
    %v1396 = vlaneseq
    %v1397 = vshrl.u32 %v1396, 7
    %v1398 = vsub.s32 %v584, %v1397
    %v1399 = vrot.slane %v1124, %v1398
    %v1400 = vlaneseq
    %v1401 = vshrl.u32 %v1400, 7
    %v1402 = vsub.s32 %v589, %v1401
    %v1403 = vrot.slane %v1127, %v1402
    %v1404 = vsel %vm518, %v1403, %v1399
    %v1405 = vlaneseq
    %v1406 = vshrl.u32 %v1405, 7
    %v1407 = vsub.s32 %v584, %v1406
    %v1408 = vrot.slane %v1130, %v1407
    %v1409 = vlaneseq
    %v1410 = vshrl.u32 %v1409, 7
    %v1411 = vsub.s32 %v589, %v1410
    %v1412 = vrot.slane %v1133, %v1411
    %v1413 = vsel %vm518, %v1412, %v1408
    %v1422 = vsel %vm762, %v1158, %v1254
    %v1423 = vsel %vm762, %v1167, %v1263
    %v1424 = vsel %vm762, %v1176, %v1272
    %v1425 = vsel %vm762, %v1185, %v1281
    %v1426 = vsel %vm762, %v1194, %v1290
    %v1427 = vsel %vm762, %v1203, %v1299
    %v1428 = vsel %vm762, %v1212, %v1308
    %v1429 = vsel %vm762, %v1221, %v1317
    %vm1430 = vcmask 1041408
    %v1431 = vsel %vm1430, %v1422, %v1350
    %v1432 = vsel %vm1430, %v1423, %v1359
    %v1433 = vsel %vm1430, %v1424, %v1368
    %v1434 = vsel %vm1430, %v1425, %v1377
    %v1435 = vsel %vm1430, %v1426, %v1386
    %v1436 = vsel %vm1430, %v1427, %v1395
    %v1437 = vsel %vm1430, %v1428, %v1404
    %v1438 = vsel %vm1430, %v1429, %v1413
    %vm1439 = vcmask 34816
    %v1440 = vsel %vm1439, %v1431, -inf
    %1441 = vmax.xlane.f32.xlu0 %v1440
    %v1442 = vpop.xlane.xlu0 %1441
    %v1443 = vsel %vm1439, %v1432, -inf
    %1444 = vmax.xlane.f32.xlu0 %v1443
    %v1445 = vpop.xlane.xlu0 %1444
    %v1446 = vsel %vm1439, %v1433, -inf
    %1447 = vmax.xlane.f32.xlu0 %v1446
    %v1448 = vpop.xlane.xlu0 %1447
    %v1449 = vsel %vm1439, %v1434, -inf
    %1450 = vmax.xlane.f32.xlu0 %v1449
    %v1451 = vpop.xlane.xlu0 %1450
    %v1452 = vsel %vm1439, %v1435, -inf
    %1453 = vmax.xlane.f32.xlu0 %v1452
    %v1454 = vpop.xlane.xlu0 %1453
    %v1455 = vsel %vm1439, %v1436, -inf
    %1456 = vmax.xlane.f32.xlu0 %v1455
    %v1457 = vpop.xlane.xlu0 %1456
    %v1458 = vsel %vm1439, %v1437, -inf
    %1459 = vmax.xlane.f32.xlu0 %v1458
    %v1460 = vpop.xlane.xlu0 %1459
    %v1461 = vsel %vm1439, %v1438, -inf
    %1462 = vmax.xlane.f32.xlu0 %v1461
    %v1463 = vpop.xlane.xlu0 %1462
    %vm1464 = vcmask 84008
    %v1465 = vsel %vm1464, %v1431, -inf
    %1466 = vmax.xlane.f32.xlu0 %v1465
    %v1467 = vpop.xlane.xlu0 %1466
    %v1468 = vsel %vm1464, %v1432, -inf
    %1469 = vmax.xlane.f32.xlu0 %v1468
    %v1470 = vpop.xlane.xlu0 %1469
    %v1471 = vsel %vm1464, %v1433, -inf
    %1472 = vmax.xlane.f32.xlu0 %v1471
    %v1473 = vpop.xlane.xlu0 %1472
    %v1474 = vsel %vm1464, %v1434, -inf
    %1475 = vmax.xlane.f32.xlu0 %v1474
    %v1476 = vpop.xlane.xlu0 %1475
    %v1477 = vsel %vm1464, %v1435, -inf
    %1478 = vmax.xlane.f32.xlu0 %v1477
    %v1479 = vpop.xlane.xlu0 %1478
    %v1480 = vsel %vm1464, %v1436, -inf
    %1481 = vmax.xlane.f32.xlu0 %v1480
    %v1482 = vpop.xlane.xlu0 %1481
    %v1483 = vsel %vm1464, %v1437, -inf
    %1484 = vmax.xlane.f32.xlu0 %v1483
    %v1485 = vpop.xlane.xlu0 %1484
    %v1486 = vsel %vm1464, %v1438, -inf
    %1487 = vmax.xlane.f32.xlu0 %v1486
    %v1488 = vpop.xlane.xlu0 %1487
    %vm1489 = vcmask 125016
    %v1490 = vsel %vm1489, %v1431, -inf
    %1491 = vmax.xlane.f32.xlu0 %v1490
    %v1492 = vpop.xlane.xlu0 %1491
    %v1493 = vsel %vm1489, %v1432, -inf
    %1494 = vmax.xlane.f32.xlu0 %v1493
    %v1495 = vpop.xlane.xlu0 %1494
    %v1496 = vsel %vm1489, %v1433, -inf
    %1497 = vmax.xlane.f32.xlu0 %v1496
    %v1498 = vpop.xlane.xlu0 %1497
    %v1499 = vsel %vm1489, %v1434, -inf
    %1500 = vmax.xlane.f32.xlu0 %v1499
    %v1501 = vpop.xlane.xlu0 %1500
    %v1502 = vsel %vm1489, %v1435, -inf
    %1503 = vmax.xlane.f32.xlu0 %v1502
    %v1504 = vpop.xlane.xlu0 %1503
    %v1505 = vsel %vm1489, %v1436, -inf
    %1506 = vmax.xlane.f32.xlu0 %v1505
    %v1507 = vpop.xlane.xlu0 %1506
    %v1508 = vsel %vm1489, %v1437, -inf
    %1509 = vmax.xlane.f32.xlu0 %v1508
    %v1510 = vpop.xlane.xlu0 %1509
    %v1511 = vsel %vm1489, %v1438, -inf
    %1512 = vmax.xlane.f32.xlu0 %v1511
    %v1513 = vpop.xlane.xlu0 %1512
    %v1522 = vlaneseq
    %v1523 = vshrl.u32 %v1522, 7
    %v1524 = vsub.s32 %v584, %v1523
    %v1525 = vrot.slane %v1442, %v1524
    %v1526 = vlaneseq
    %v1527 = vshrl.u32 %v1526, 7
    %v1528 = vsub.s32 %v584, %v1527
    %v1529 = vrot.slane %v1445, %v1528
    %v1530 = vlaneseq
    %v1531 = vshrl.u32 %v1530, 7
    %v1532 = vsub.s32 %v584, %v1531
    %v1533 = vrot.slane %v1448, %v1532
    %v1534 = vlaneseq
    %v1535 = vshrl.u32 %v1534, 7
    %v1536 = vsub.s32 %v584, %v1535
    %v1537 = vrot.slane %v1451, %v1536
    %v1538 = vlaneseq
    %v1539 = vshrl.u32 %v1538, 7
    %v1540 = vsub.s32 %v584, %v1539
    %v1541 = vrot.slane %v1454, %v1540
    %v1542 = vlaneseq
    %v1543 = vshrl.u32 %v1542, 7
    %v1544 = vsub.s32 %v584, %v1543
    %v1545 = vrot.slane %v1457, %v1544
    %v1546 = vlaneseq
    %v1547 = vshrl.u32 %v1546, 7
    %v1548 = vsub.s32 %v584, %v1547
    %v1549 = vrot.slane %v1460, %v1548
    %v1550 = vlaneseq
    %v1551 = vshrl.u32 %v1550, 7
    %v1552 = vsub.s32 %v584, %v1551
    %v1553 = vrot.slane %v1463, %v1552
    %v1570 = vlaneseq
    %v1571 = vshrl.u32 %v1570, 7
    %v1572 = vsub.s32 %v584, %v1571
    %v1573 = vrot.slane %v1467, %v1572
    %v1574 = vlaneseq
    %v1575 = vshrl.u32 %v1574, 7
    %v1576 = vsub.s32 %v584, %v1575
    %v1577 = vrot.slane %v1470, %v1576
    %v1578 = vlaneseq
    %v1579 = vshrl.u32 %v1578, 7
    %v1580 = vsub.s32 %v584, %v1579
    %v1581 = vrot.slane %v1473, %v1580
    %v1582 = vlaneseq
    %v1583 = vshrl.u32 %v1582, 7
    %v1584 = vsub.s32 %v584, %v1583
    %v1585 = vrot.slane %v1476, %v1584
    %v1586 = vlaneseq
    %v1587 = vshrl.u32 %v1586, 7
    %v1588 = vsub.s32 %v584, %v1587
    %v1589 = vrot.slane %v1479, %v1588
    %v1590 = vlaneseq
    %v1591 = vshrl.u32 %v1590, 7
    %v1592 = vsub.s32 %v584, %v1591
    %v1593 = vrot.slane %v1482, %v1592
    %v1594 = vlaneseq
    %v1595 = vshrl.u32 %v1594, 7
    %v1596 = vsub.s32 %v584, %v1595
    %v1597 = vrot.slane %v1485, %v1596
    %v1598 = vlaneseq
    %v1599 = vshrl.u32 %v1598, 7
    %v1600 = vsub.s32 %v584, %v1599
    %v1601 = vrot.slane %v1488, %v1600
    %v1618 = vlaneseq
    %v1619 = vshrl.u32 %v1618, 7
    %v1620 = vsub.s32 %v584, %v1619
    %v1621 = vrot.slane %v1492, %v1620
    %v1622 = vlaneseq
    %v1623 = vshrl.u32 %v1622, 7
    %v1624 = vsub.s32 %v584, %v1623
    %v1625 = vrot.slane %v1495, %v1624
    %v1626 = vlaneseq
    %v1627 = vshrl.u32 %v1626, 7
    %v1628 = vsub.s32 %v584, %v1627
    %v1629 = vrot.slane %v1498, %v1628
    %v1630 = vlaneseq
    %v1631 = vshrl.u32 %v1630, 7
    %v1632 = vsub.s32 %v584, %v1631
    %v1633 = vrot.slane %v1501, %v1632
    %v1634 = vlaneseq
    %v1635 = vshrl.u32 %v1634, 7
    %v1636 = vsub.s32 %v584, %v1635
    %v1637 = vrot.slane %v1504, %v1636
    %v1638 = vlaneseq
    %v1639 = vshrl.u32 %v1638, 7
    %v1640 = vsub.s32 %v584, %v1639
    %v1641 = vrot.slane %v1507, %v1640
    %v1642 = vlaneseq
    %v1643 = vshrl.u32 %v1642, 7
    %v1644 = vsub.s32 %v584, %v1643
    %v1645 = vrot.slane %v1510, %v1644
    %v1646 = vlaneseq
    %v1647 = vshrl.u32 %v1646, 7
    %v1648 = vsub.s32 %v584, %v1647
    %v1649 = vrot.slane %v1513, %v1648
    %v1658 = vsel %vm762, %v1525, %v1573
    %v1659 = vsel %vm762, %v1529, %v1577
    %v1660 = vsel %vm762, %v1533, %v1581
    %v1661 = vsel %vm762, %v1537, %v1585
    %v1662 = vsel %vm762, %v1541, %v1589
    %v1663 = vsel %vm762, %v1545, %v1593
    %v1664 = vsel %vm762, %v1549, %v1597
    %v1665 = vsel %vm762, %v1553, %v1601
    %v1666 = vsel %vm1430, %v1658, %v1621
    %v1667 = vsel %vm1430, %v1659, %v1625
    %v1668 = vsel %vm1430, %v1660, %v1629
    %v1669 = vsel %vm1430, %v1661, %v1633
    %v1670 = vsel %vm1430, %v1662, %v1637
    %v1671 = vsel %vm1430, %v1663, %v1641
    %v1672 = vsel %vm1430, %v1664, %v1645
    %v1673 = vsel %vm1430, %v1665, %v1649
    %v1674 = vcombine.low %v1666, %v1668
    %v1676 = vunpack.c.l.s4 1983009808
    %v1677 = vunpack.c.0.s8 %v1676
    %v1678 = vlaneseq
    %v1679 = vshrl.u32 %v1678, 7
    %v1680 = vsub.s32 %v1677, %v1679
    %v1681 = vrot.slane %v1674, %v1680
    %v1682 = vcombine.low %v1667, %v1669
    %v1684 = vunpack.c.l.s4 1983009808
    %v1685 = vunpack.c.0.s8 %v1684
    %v1686 = vlaneseq
    %v1687 = vshrl.u32 %v1686, 7
    %v1688 = vsub.s32 %v1685, %v1687
    %v1689 = vrot.slane %v1682, %v1688
    %v1690 = vcombine.low %v1670, %v1672
    %v1692 = vunpack.c.l.s4 1983009808
    %v1693 = vunpack.c.0.s8 %v1692
    %v1694 = vlaneseq
    %v1695 = vshrl.u32 %v1694, 7
    %v1696 = vsub.s32 %v1693, %v1695
    %v1697 = vrot.slane %v1690, %v1696
    %v1698 = vcombine.low %v1671, %v1673
    %v1700 = vunpack.c.l.s4 1983009808
    %v1701 = vunpack.c.0.s8 %v1700
    %v1702 = vlaneseq
    %v1703 = vshrl.u32 %v1702, 7
    %v1704 = vsub.s32 %v1701, %v1703
    %v1705 = vrot.slane %v1698, %v1704
    %v1706 = vcombine.low %v1681, %v1689
    %v1707 = vcombine.high %v1681, %v1689
    %v1709 = vunpack.c.l.s4 1934713408
    %v1710 = vunpack.c.0.s8 %v1709
    %v1711 = vlaneseq
    %v1712 = vshrl.u32 %v1711, 7
    %v1713 = vsub.s32 %v1710, %v1712
    %v1714 = vrot.slane %v1706, %v1713
    %v1716 = vunpack.c.l.s4 1934713408
    %v1717 = vunpack.c.0.s8 %v1716
    %v1718 = vlaneseq
    %v1719 = vshrl.u32 %v1718, 7
    %v1720 = vsub.s32 %v1717, %v1719
    %v1721 = vrot.slane %v1707, %v1720
    %v1722 = vcombine.low %v1697, %v1705
    %v1723 = vcombine.high %v1697, %v1705
    %v1725 = vunpack.c.l.s4 1934713408
    %v1726 = vunpack.c.0.s8 %v1725
    %v1727 = vlaneseq
    %v1728 = vshrl.u32 %v1727, 7
    %v1729 = vsub.s32 %v1726, %v1728
    %v1730 = vrot.slane %v1722, %v1729
    %v1732 = vunpack.c.l.s4 1934713408
    %v1733 = vunpack.c.0.s8 %v1732
    %v1734 = vlaneseq
    %v1735 = vshrl.u32 %v1734, 7
    %v1736 = vsub.s32 %v1733, %v1735
    %v1737 = vrot.slane %v1723, %v1736
    %v1738 = vcombine.low %v1714, %v1730
    %v1739 = vcombine.high %v1714, %v1730
    %v1740 = vcombine.low %v1721, %v1737
    %1742 = vrot.lane.b32.xlu0 %v1739, 3
    %v1743 = vpop.permute.xlu0 %1742
    %1746 = vrot.lane.b32.xlu0 %v1740, 6
    %v1747 = vpop.permute.xlu0 %1746
    %vm1749 = vcmask 23552
    %v1750 = vsel %vm1749, %v1738, %v1743
    %vm1751 = vcmask 48128
    %v1752 = vsel %vm1751, %v1750, %v1747
    %1754 = vrot.lane.b32.xlu0 %v1752, 5
    %v1755 = vpop.permute.xlu0 %1754
    %vm1757 = vcmask 113704
    %1758 = vst.msk [vmem:[#allocation5] sm:$0xff] %vm1757, %v1755
    // Predicated region
    $region10: #{tpu_custom_call.1} parent=1 // pred_check
      _
    $region11: #{tpu_custom_call.1} parent=1 // pred_check_branch
      %1760 = sbr.rel (0) target = $region13
    $region12: #{tpu_custom_call.1} parent=1 // pred_region
      %s1762 = ssub.s32 128, 128
      %1763 = vsyncadd [#allocation4], %s1762
      %s1765 = sshll.u32 [#allocation5], 4
      %s1766 = int_to_ptr.vmem [resolvable:$true] %s1765
      %1768 = dma.vmem_to_hbm [thread:$0]  %s1766, 128, %s1, [#allocation4]
    $region13: #{tpu_custom_call.1} parent=1 // pred_fallthru
      _
    // Predicated region
    $region14: #{tpu_custom_call.1} parent=1 // pred_check
      _
    $region15: #{tpu_custom_call.1} parent=1 // pred_check_branch
      %1770 = sbr.rel (0) target = $region17
    $region16: #{tpu_custom_call.1} parent=1 // pred_region
      %1771 = dma.done [#allocation4], 128
    $region17: #{tpu_custom_call.1} parent=1 // pred_fallthru
      _
    %1772 = vsyncpa [#allocation3], 1
    %1773 = vsyncpa [#allocation4], 1

</llo_original>
